<compile_context>
chip_gen: v6e
topology: v6e:2x2x1
jax: 0.10.0
libtpu: 0.0.40
codegen_flags: <defaults>
</compile_context>

<pallas_src>
import functools
import math

import jax
import jax.numpy as jnp
from jax.experimental import pallas as pl
from jax.experimental.pallas import tpu as pltpu


_NUM_CORES = 2  # v7x has 2 TensorCores per chip; harmless (sequential) on v5e/v6e.


def _gce_kernel(pred_ref, labels_ref, out_ref, acc_ref, *,
                q, n_total, tile_rows, tiles_per_core):
    # pred_ref:   (TN, C)     native dtype (batch rows on sublanes, classes on lanes)
    # labels_ref: (TN, 1)     int32
    # out_ref:    (1, 8, 128) f32  per-core partial sum, already divided by q*N
    # acc_ref:    (TN, 1)     f32  VMEM scratch, per-row running (1 - p_true^q)
    core = pl.program_id(0)     # which batch half (maps to a TensorCore on v7x)
    step = pl.program_id(1)     # tile index within this half

    @pl.when(step == 0)
    def _init():
        acc_ref[...] = jnp.zeros_like(acc_ref)

    x = pred_ref[...].astype(jnp.float32)                     # (TN, C)
    tn, nc = x.shape
    labels = labels_ref[...]                                  # (TN, 1) int32

    # log-softmax pieces; reductions over the class (lane) axis.
    m = jnp.max(x, axis=1, keepdims=True)                     # (TN, 1)
    s = jnp.sum(jnp.exp(x - m), axis=1, keepdims=True)        # (TN, 1)

    # Logit of the labeled class: single-vreg class iota, broadcast compare,
    # select + lane sum (kept on VPU/XLU on purpose — no MXU reformulation).
    cls = jax.lax.broadcasted_iota(jnp.int32, (1, nc), 1)     # (1, C)
    x_true = jnp.sum(jnp.where(cls == labels, x, 0.0),
                     axis=1, keepdims=True)                   # (TN, 1)

    # log p_true = x_true - m - log(sum exp); clamp(p, 1e-7, 1.0) in log space.
    log_p = x_true - m - jnp.log(s)
    log_p = jnp.clip(log_p, jnp.float32(math.log(1e-7)), jnp.float32(0.0))

    # p_true^q = exp(q * log p_true).  The /q and /N are applied once at the
    # very end, not per element.
    contrib = 1.0 - jnp.exp(jnp.float32(q) * log_p)           # (TN, 1)

    # Global row offset of this tile (unclamped — used only for masking).
    row0 = (core * tiles_per_core + step) * tile_rows

    # Vector accumulate.  Mask only tiles that can contain invalid rows (the
    # ragged last tile, or phantom tiles of the second core); full tiles take
    # the unmasked path.  jnp.where is a select, so garbage rows that became
    # NaN through exp/log never reach the sum.
    @pl.when(row0 + tile_rows <= n_total)
    def _acc_full():
        acc_ref[...] += contrib

    @pl.when(row0 + tile_rows > n_total)
    def _acc_masked():
        rows = row0 + jax.lax.broadcasted_iota(jnp.int32, (tn, 1), 0)
        acc_ref[...] += jnp.where(rows < n_total, contrib, 0.0)

    @pl.when(step == tiles_per_core - 1)
    def _finalize():
        part = jnp.sum(acc_ref[...]) / jnp.float32(q * n_total)
        out_ref[...] = jnp.full(out_ref.shape, part, jnp.float32)


def gce_loss(pred, labels, num_classes=10, q=0.7, tile_n=8192):
    """pred: (N, C) float (any dtype), labels: (N,) int.  Returns f32 scalar."""
    assert pred.ndim == 2 and pred.shape[1] == num_classes
    n, c = pred.shape
    assert n >= 1 and labels.shape == (n,)

    # Labels as an (N, 1) int32 column so each row's label sits on the same
    # sublane as its logits (reshape is metadata-only; no extra HBM pass).
    labels_col = labels.astype(jnp.int32).reshape(n, 1)

    # Tile the batch (sublane) axis.  No transpose, no pad: the ragged last
    # tile is masked in-kernel.  For small N the single block equals the full
    # array (any N allowed); the tiled path uses a sublane-aligned tile.
    if n <= tile_n:
        tn = n
    else:
        tn = max(8, (tile_n // 8) * 8)
    total_tiles = pl.cdiv(n, tn)
    tiles_per_core = pl.cdiv(total_tiles, _NUM_CORES)
    grid = (_NUM_CORES, tiles_per_core)

    def tile_map(core, step):
        # Clamp so phantom tiles (odd tile count / tiny N on the second core)
        # never DMA out of bounds; their rows are masked away in the kernel.
        t = jnp.minimum(core * tiles_per_core + step, total_tiles - 1)
        return (t, 0)

    kernel = functools.partial(_gce_kernel, q=float(q), n_total=int(n),
                               tile_rows=tn, tiles_per_core=tiles_per_core)

    cost = pl.CostEstimate(
        flops=8 * n * c,
        transcendentals=n * c + 2 * n,
        bytes_accessed=int(n * c * pred.dtype.itemsize + n * 4
                           + _NUM_CORES * 8 * 128 * 4),
    )

    out = pl.pallas_call(
        kernel,
        out_shape=jax.ShapeDtypeStruct((_NUM_CORES, 8, 128), jnp.float32),
        grid=grid,
        in_specs=[
            pl.BlockSpec((tn, c), tile_map),      # pred   (TN, C), contiguous DMA
            pl.BlockSpec((tn, 1), tile_map),      # labels (TN, 1)
        ],
        out_specs=pl.BlockSpec((1, 8, 128), lambda core, step: (core, 0, 0)),
        scratch_shapes=[pltpu.VMEM((tn, 1), jnp.float32)],
        compiler_params=pltpu.CompilerParams(
            dimension_semantics=("parallel", "arbitrary"),
            vmem_limit_bytes=48 * 1024 * 1024),
        cost_estimate=cost,
    )(pred, labels_col)

    # Sum the two per-core partials (each already divided by q*N).
    return out[0, 0, 0] + out[1, 0, 0]


def _gce_ref(pred, labels, num_classes=10, q=0.7):
    p = jax.nn.softmax(pred.astype(jnp.float32), axis=1)
    p = jnp.clip(p, 1e-7, 1.0)
    oh = jax.nn.one_hot(labels, num_classes, dtype=jnp.float32)
    loss = (1.0 - jnp.power(jnp.sum(oh * p, axis=1), q)) / q
    return jnp.mean(loss)


if __name__ == "__main__":
    num_classes = 10
    q = 0.7

    # Small case matching the module defaults (single tile per core).
    k_pred, k_lab = jax.random.split(jax.random.PRNGKey(0))
    pred = jax.random.normal(k_pred, (8, num_classes), dtype=jnp.float32)
    labels = jax.random.randint(k_lab, (8,), 0, num_classes, dtype=jnp.int32)
    out = jax.block_until_ready(gce_loss(pred, labels, num_classes, q))
    ref = _gce_ref(pred, labels, num_classes, q)
    assert jnp.allclose(out, ref, atol=1e-5, rtol=1e-5), (out, ref)

    # Multi-tile case: non-multiple N exercises the ragged last tile, the
    # in-kernel mask, the clamped phantom tile and the two-half accumulation
    # (grid = (2, 2)).
    k_pred2, k_lab2 = jax.random.split(jax.random.PRNGKey(1))
    pred2 = jax.random.normal(k_pred2, (300, num_classes), dtype=jnp.float32)
    labels2 = jax.random.randint(k_lab2, (300,), 0, num_classes, dtype=jnp.int32)
    out2 = jax.block_until_ready(
        gce_loss(pred2, labels2, num_classes, q, tile_n=128))
    ref2 = _gce_ref(pred2, labels2, num_classes, q)
    assert jnp.allclose(out2, ref2, atol=1e-5, rtol=1e-5), (out2, ref2)

    # Native bf16 input (no wrapper-side f32 up-cast; cast happens in-kernel).
    pred_bf16 = pred2.astype(jnp.bfloat16)
    out3 = jax.block_until_ready(gce_loss(pred_bf16, labels2, num_classes, q))
    ref3 = _gce_ref(pred_bf16.astype(jnp.float32), labels2, num_classes, q)
    assert jnp.allclose(out3, ref3, atol=1e-3, rtol=1e-3), (out3, ref3)

    print("KERNEL_OK")
</pallas_src>

<mosaic_0001>
module attributes {stable_mosaic.version = 11 : i64} {
  func.func @_gce_kernel(%arg0: i32, %arg1: i32, %arg2: memref<8x10xf32, #tpu.memory_space<vmem>>, %arg3: memref<8x1xi32, #tpu.memory_space<vmem>>, %arg4: memref<1x8x128xf32, #tpu.memory_space<vmem>>, %arg5: memref<8x1xf32, #tpu.memory_space<vmem>>) attributes {dimension_semantics = [#tpu.dimension_semantics<parallel>, #tpu.dimension_semantics<arbitrary>], iteration_bounds = array<i64: 2, 1>, scalar_prefetch = 0 : i64, scratch_operands = 1 : i64, tpu.core_type = #tpu.core_type<tc>, window_params = [{transform_indices = @transform_0, window_bounds = array<i64: 8, 10>}, {transform_indices = @transform_1, window_bounds = array<i64: 8, 1>}, {transform_indices = @transform_2, window_bounds = array<i64: 1, 8, 128>}]} {
    %c0_i32 = arith.constant 0 : i32
    %0 = arith.cmpi eq, %arg1, %c0_i32 : i32
    %1 = arith.extui %0 : i1 to i32
    %c0_i32_0 = arith.constant 0 : i32
    %2 = arith.cmpi ne, %1, %c0_i32_0 : i32
    scf.if %2 {
      %cst_19 = arith.constant 0.000000e+00 : f32
      %46 = vector.broadcast %cst_19 : f32 to vector<8x1xf32>
      %c0_20 = arith.constant 0 : index
      %c0_21 = arith.constant 0 : index
      %47 = vector.load %arg5[%c0_20, %c0_21] : memref<8x1xf32, #tpu.memory_space<vmem>>, vector<8x1xf32>
      tpu.vector_store %arg5[%c0_20, %c0_21], %46 {strides = array<i32>} : memref<8x1xf32, #tpu.memory_space<vmem>>, vector<8x1xf32>,
    } else {
    }
    %c0 = arith.constant 0 : index
    %c0_1 = arith.constant 0 : index
    %3 = vector.load %arg2[%c0, %c0_1] : memref<8x10xf32, #tpu.memory_space<vmem>>, vector<8x10xf32>
    %c0_2 = arith.constant 0 : index
    %c0_3 = arith.constant 0 : index
    %4 = vector.load %arg3[%c0_2, %c0_3] : memref<8x1xi32, #tpu.memory_space<vmem>>, vector<8x1xi32>
    %cst = arith.constant dense<0xFF800000> : vector<8xf32>
    %5 = vector.multi_reduction <maximumf>, %3, %cst [1] : vector<8x10xf32> to vector<8xf32>
    %6 = vector.shape_cast %5 : vector<8xf32> to vector<8x1xf32>
    %7 = vector.broadcast %6 : vector<8x1xf32> to vector<8x10xf32>
    %8 = arith.subf %3, %7 : vector<8x10xf32>
    %9 = math.exp %8 : vector<8x10xf32>
    %cst_4 = arith.constant dense<0.000000e+00> : vector<8xf32>
    %10 = vector.multi_reduction <add>, %9, %cst_4 [1] : vector<8x10xf32> to vector<8xf32>
    %11 = vector.shape_cast %10 : vector<8xf32> to vector<8x1xf32>
    %12 = tpu.iota {dimensions = array<i32: 1>} : vector<1x10xi32>
    %13 = vector.broadcast %12 : vector<1x10xi32> to vector<8x10xi32>
    %14 = vector.broadcast %4 : vector<8x1xi32> to vector<8x10xi32>
    %15 = arith.cmpi eq, %13, %14 : vector<8x10xi32>
    %cst_5 = arith.constant 0.000000e+00 : f32
    %16 = vector.broadcast %cst_5 : f32 to vector<8x10xf32>
    %17 = arith.select %15, %3, %16 : vector<8x10xi1>, vector<8x10xf32>
    %cst_6 = arith.constant dense<0.000000e+00> : vector<8xf32>
    %18 = vector.multi_reduction <add>, %17, %cst_6 [1] : vector<8x10xf32> to vector<8xf32>
    %19 = vector.shape_cast %18 : vector<8xf32> to vector<8x1xf32>
    %20 = arith.subf %19, %6 : vector<8x1xf32>
    %21 = math.log %11 : vector<8x1xf32>
    %22 = arith.subf %20, %21 : vector<8x1xf32>
    %cst_7 = arith.constant -16.1180954 : f32
    %cst_8 = arith.constant 0.000000e+00 : f32
    %23 = vector.broadcast %cst_7 : f32 to vector<8x1xf32>
    %24 = arith.maximumf %23, %22 : vector<8x1xf32>
    %25 = vector.broadcast %cst_8 : f32 to vector<8x1xf32>
    %26 = arith.minimumf %25, %24 : vector<8x1xf32>
    %cst_9 = arith.constant 0.699999988 : f32
    %27 = vector.broadcast %cst_9 : f32 to vector<8x1xf32>
    %28 = arith.mulf %27, %26 : vector<8x1xf32>
    %29 = math.exp %28 : vector<8x1xf32>
    %cst_10 = arith.constant 1.000000e+00 : f32
    %30 = vector.broadcast %cst_10 : f32 to vector<8x1xf32>
    %31 = arith.subf %30, %29 : vector<8x1xf32>
    %c1_i32 = arith.constant 1 : i32
    %32 = arith.muli %arg0, %c1_i32 : i32
    %33 = arith.addi %32, %arg1 : i32
    %c8_i32 = arith.constant 8 : i32
    %34 = arith.muli %33, %c8_i32 : i32
    %c8_i32_11 = arith.constant 8 : i32
    %35 = arith.addi %34, %c8_i32_11 : i32
    %c8_i32_12 = arith.constant 8 : i32
    %36 = arith.cmpi sle, %35, %c8_i32_12 : i32
    %37 = arith.extui %36 : i1 to i32
    %c0_i32_13 = arith.constant 0 : i32
    %38 = arith.cmpi ne, %37, %c0_i32_13 : i32
    scf.if %38 {
      %c0_19 = arith.constant 0 : index
      %c0_20 = arith.constant 0 : index
      %46 = vector.load %arg5[%c0_19, %c0_20] : memref<8x1xf32, #tpu.memory_space<vmem>>, vector<8x1xf32>
      %47 = arith.addf %46, %31 : vector<8x1xf32>
      %c0_21 = arith.constant 0 : index
      %c0_22 = arith.constant 0 : index
      %48 = vector.load %arg5[%c0_21, %c0_22] : memref<8x1xf32, #tpu.memory_space<vmem>>, vector<8x1xf32>
      tpu.vector_store %arg5[%c0_21, %c0_22], %47 {strides = array<i32>} : memref<8x1xf32, #tpu.memory_space<vmem>>, vector<8x1xf32>,
    } else {
    }
    %c8_i32_14 = arith.constant 8 : i32
    %39 = arith.addi %34, %c8_i32_14 : i32
    %c8_i32_15 = arith.constant 8 : i32
    %40 = arith.cmpi sgt, %39, %c8_i32_15 : i32
    %41 = arith.extui %40 : i1 to i32
    %c0_i32_16 = arith.constant 0 : i32
    %42 = arith.cmpi ne, %41, %c0_i32_16 : i32
    scf.if %42 {
      %46 = tpu.iota {dimensions = array<i32: 0>} : vector<8x1xi32>
      %47 = vector.broadcast %34 : i32 to vector<8x1xi32>
      %48 = arith.addi %47, %46 : vector<8x1xi32>
      %c0_19 = arith.constant 0 : index
      %c0_20 = arith.constant 0 : index
      %49 = vector.load %arg5[%c0_19, %c0_20] : memref<8x1xf32, #tpu.memory_space<vmem>>, vector<8x1xf32>
      %c8_i32_21 = arith.constant 8 : i32
      %50 = vector.broadcast %c8_i32_21 : i32 to vector<8x1xi32>
      %51 = arith.cmpi slt, %48, %50 : vector<8x1xi32>
      %cst_22 = arith.constant 0.000000e+00 : f32
      %52 = vector.broadcast %cst_22 : f32 to vector<8x1xf32>
      %53 = arith.select %51, %31, %52 : vector<8x1xi1>, vector<8x1xf32>
      %54 = arith.addf %49, %53 : vector<8x1xf32>
      %c0_23 = arith.constant 0 : index
      %c0_24 = arith.constant 0 : index
      %55 = vector.load %arg5[%c0_23, %c0_24] : memref<8x1xf32, #tpu.memory_space<vmem>>, vector<8x1xf32>
      tpu.vector_store %arg5[%c0_23, %c0_24], %54 {strides = array<i32>} : memref<8x1xf32, #tpu.memory_space<vmem>>, vector<8x1xf32>,
    } else {
    }
    %c0_i32_17 = arith.constant 0 : i32
    %43 = arith.cmpi eq, %arg1, %c0_i32_17 : i32
    %44 = arith.extui %43 : i1 to i32
    %c0_i32_18 = arith.constant 0 : i32
    %45 = arith.cmpi ne, %44, %c0_i32_18 : i32
    scf.if %45 {
      %c0_19 = arith.constant 0 : index
      %c0_20 = arith.constant 0 : index
      %46 = vector.load %arg5[%c0_19, %c0_20] : memref<8x1xf32, #tpu.memory_space<vmem>>, vector<8x1xf32>
      %47 = vector.shape_cast %46 : vector<8x1xf32> to vector<1x8x1xf32>
      %cst_21 = arith.constant dense<0.000000e+00> : vector<1xf32>
      %48 = vector.multi_reduction <add>, %47, %cst_21 [1, 2] : vector<1x8x1xf32> to vector<1xf32>
      %49 = vector.shape_cast %48 : vector<1xf32> to vector<1x1x1xf32>
      %50 = vector.extract %49[0, 0, 0] : f32 from vector<1x1x1xf32>
      %cst_22 = arith.constant 5.600000e+00 : f32
      %51 = arith.divf %50, %cst_22 : f32
      %52 = vector.broadcast %51 : f32 to vector<1x8x128xf32>
      %c0_23 = arith.constant 0 : index
      %c0_24 = arith.constant 0 : index
      %c0_25 = arith.constant 0 : index
      %53 = vector.load %arg4[%c0_23, %c0_24, %c0_25] : memref<1x8x128xf32, #tpu.memory_space<vmem>>, vector<1x8x128xf32>
      tpu.vector_store %arg4[%c0_23, %c0_24, %c0_25], %52 {strides = array<i32>} : memref<1x8x128xf32, #tpu.memory_space<vmem>>, vector<1x8x128xf32>,
    } else {
    }
    return
  }
  func.func @transform_0(%arg0: i32, %arg1: i32) -> (i32, i32) {
    %c1_i32 = arith.constant 1 : i32
    %0 = arith.muli %arg0, %c1_i32 : i32
    %1 = arith.addi %0, %arg1 : i32
    %c0_i32 = arith.constant 0 : i32
    %2 = arith.minsi %1, %c0_i32 : i32
    %c0_i32_0 = arith.constant 0 : i32
    %c0_i32_1 = arith.constant 0 : i32
    return %2, %c0_i32_0 : i32, i32
  }
  func.func @transform_1(%arg0: i32, %arg1: i32) -> (i32, i32) {
    %c1_i32 = arith.constant 1 : i32
    %0 = arith.muli %arg0, %c1_i32 : i32
    %1 = arith.addi %0, %arg1 : i32
    %c0_i32 = arith.constant 0 : i32
    %2 = arith.minsi %1, %c0_i32 : i32
    %c0_i32_0 = arith.constant 0 : i32
    %c0_i32_1 = arith.constant 0 : i32
    return %2, %c0_i32_0 : i32, i32
  }
  func.func @transform_2(%arg0: i32, %arg1: i32) -> (i32, i32, i32) {
    %c0_i32 = arith.constant 0 : i32
    %c0_i32_0 = arith.constant 0 : i32
    %c0_i32_1 = arith.constant 0 : i32
    return %arg0, %c0_i32, %c0_i32_0 : i32, i32, i32
  }
}

</mosaic_0001>

<llo_original>
// kernel: tpu_custom_call.1
$region0: #{tpu_custom_call.1}
  #allocation0 [shape = 'u32[]', space=smem, size = 0x4, offset = 0x4, fixed_abs, tag = 'smem constant byte address 0x4 - core index']
  #allocation1 [shape = 'u32[144,128]{1,0:T(1,128)}', space=vmem, size = 0x12000, scoped, tag = 'internal scratch']
  #allocation2 [shape = 'f32[8,1]{1,0:T(8,128)}', space=vmem, size = 0x1000, scoped, tag = 'scratch operand']
  %s0 = inlined_call_operand.vmem [shape: f32[8,10], index: 0, kind: input, shape index: {}]
  %s1 = inlined_call_operand.vmem [shape: s32[8,1], index: 1, kind: input, shape index: {}]
  %s2 = inlined_call_operand.hbm [shape: f32[2,8,128], index: 2, kind: output, shape index: {}]
  %s3 = sld [smem:[#allocation0]]
  $region57: #{tpu_custom_call.1} parent=0
    _
  %s5 = ssub.s32 1, %s3
  %s6 = scalar_select 0, %s5, %s3
  $region1: #{tpu_custom_call.1} parent=0
    #allocation3 [shape = 'u8[8192]{0}', space=vmem, size = 0x2000, scoped, tag = 'output window, operand 0']
    #allocation4 [shape = 's32[2]{0}', space=sflag, size = 0x8, scoped, tag = 'scoped memory for tpu_custom_call.1']
    %7 = vsyncpa [#allocation4], 0
    %s8 = scalar_lea.sflag [#allocation4], 1
    %9 = vsyncpa %s8, 0
    loop: start=0, step=1, limit=4
    $region2: #{tpu_custom_call.1} parent=1 // loop_pre_header
      _
    $region3: #{tpu_custom_call.1} parent=1 // loop_header
      %s11 = sphi 0, %s15
      %p12 = scmp.ge.s32.totalorder %s11, 4
      %s18 = sphi 0, %s30
      %s19 = sphi 0, %s26
      %s20 = sphi 0, %s18
      %s21 = sphi 0, %s19
      %s22 = sphi 0, %s20
      %s23 = sphi 0, %s21
      %s39 = sphi 0, %s41
      %s42 = sphi 0, %s39
      %s43 = sphi 0, %s42
      %s59 = sphi 0, %s43
      %s71 = sphi 0, %s73
      %s74 = sphi 0, %s71
      %s75 = sphi 0, %s74
      %s91 = sphi 0, %s75
      %s97 = sphi 0, %s99
      %s100 = sphi 0, %s97
      %s101 = sphi 0, %s100
      %s117 = sphi 0, %s101
    $region4: #{tpu_custom_call.1} parent=1 // loop_header_branch
      %14 = sbr.rel (%p12) target = $region8
    $region5: #{tpu_custom_call.1} parent=1 // loop_body
      %s16 = ssub.s32 %s11, 1
      %s17 = ssub.s32 %s11, 2
      %s24 = sadd.s32 1, %s19
      %p25 = scmp.ge.s32.totalorder %s24, 1
      %s26 = scalar_select %p25, 0, %s24
      %s27 = sadd.s32 1, %s18
      %s28 = scalar_select %p25, %s27, %s18
      %p29 = scmp.ge.s32.totalorder %s28, 2
      %s30 = scalar_select %p29, 0, %s28
      %s31 = sadd.s32 %s18, %s19
      %p32 = scmp.lt.s32.totalorder %s31, 0
      %s33 = scalar_select %p32, %s31, 0
      %s34 = sadd.s32 %s30, %s26
      %p35 = scmp.lt.s32.totalorder %s34, 0
      %s36 = scalar_select %p35, %s34, 0
      %s37 = ssub.s32 %s33, %s36
      %p38 = scmp.eq.s32.totalorder %s37, 0
      %s40 = sadd.s32 %s39, 1
      %s41 = scalar_select %p38, %s39, %s40
      %p44 = pneg %p38
      %p45 = scmp.eq.s32.totalorder %s11, 1
      %p46 = por %p44, %p45
      %p47 = scmp.ne.s32.totalorder %s39, %s42
      %p48 = scmp.eq.s32.totalorder %s11, 0
      %p49 = por %p47, %p48
      %p50 = scmp.ne.s32.totalorder %s39, %s42
      %p51 = scmp.eq.s32.totalorder %s16, 1
      %p52 = por %p50, %p51
      %p53 = scmp.ne.s32.totalorder %s42, %s43
      %p54 = scmp.eq.s32.totalorder %s16, 0
      %p55 = por %p53, %p54
      %p56 = scmp.ne.s32.totalorder %s42, %s43
      %p57 = scmp.eq.s32.totalorder %s17, 1
      %p58 = por %p56, %p57
      %p60 = scmp.ne.s32.totalorder %s43, %s59
      %p61 = scmp.eq.s32.totalorder %s17, 0
      %p62 = por %p60, %p61
      %s63 = sadd.s32 %s18, %s19
      %p64 = scmp.lt.s32.totalorder %s63, 0
      %s65 = scalar_select %p64, %s63, 0
      %s66 = sadd.s32 %s30, %s26
      %p67 = scmp.lt.s32.totalorder %s66, 0
      %s68 = scalar_select %p67, %s66, 0
      %s69 = ssub.s32 %s65, %s68
      %p70 = scmp.eq.s32.totalorder %s69, 0
      %s72 = sadd.s32 %s71, 1
      %s73 = scalar_select %p70, %s71, %s72
      %p76 = pneg %p70
      %p77 = scmp.eq.s32.totalorder %s11, 1
      %p78 = por %p76, %p77
      %p79 = scmp.ne.s32.totalorder %s71, %s74
      %p80 = scmp.eq.s32.totalorder %s11, 0
      %p81 = por %p79, %p80
      %p82 = scmp.ne.s32.totalorder %s71, %s74
      %p83 = scmp.eq.s32.totalorder %s16, 1
      %p84 = por %p82, %p83
      %p85 = scmp.ne.s32.totalorder %s74, %s75
      %p86 = scmp.eq.s32.totalorder %s16, 0
      %p87 = por %p85, %p86
      %p88 = scmp.ne.s32.totalorder %s74, %s75
      %p89 = scmp.eq.s32.totalorder %s17, 1
      %p90 = por %p88, %p89
      %p92 = scmp.ne.s32.totalorder %s75, %s91
      %p93 = scmp.eq.s32.totalorder %s17, 0
      %p94 = por %p92, %p93
      %s95 = ssub.s32 %s18, %s30
      %p96 = scmp.eq.s32.totalorder %s95, 0
      %s98 = sadd.s32 %s97, 1
      %s99 = scalar_select %p96, %s97, %s98
      %p102 = pneg %p96
      %p103 = scmp.eq.s32.totalorder %s11, 1
      %p104 = por %p102, %p103
      %p105 = scmp.ne.s32.totalorder %s97, %s100
      %p106 = scmp.eq.s32.totalorder %s11, 0
      %p107 = por %p105, %p106
      %p108 = scmp.ne.s32.totalorder %s97, %s100
      %p109 = scmp.eq.s32.totalorder %s16, 1
      %p110 = por %p108, %p109
      %p111 = scmp.ne.s32.totalorder %s100, %s101
      %p112 = scmp.eq.s32.totalorder %s16, 0
      %p113 = por %p111, %p112
      %p114 = scmp.ne.s32.totalorder %s100, %s101
      %p115 = scmp.eq.s32.totalorder %s17, 1
      %p116 = por %p114, %p115
      %p118 = scmp.ne.s32.totalorder %s101, %s117
      %p119 = scmp.eq.s32.totalorder %s17, 0
      %p120 = por %p118, %p119
      %p121 = scmp.le.s32.totalorder 1, %s11
      %p122 = scmp.lt.s32.totalorder %s11, 3
      %p123 = pnand %p121, %p122
      %p124 = pneg %p123
      // Predicated region
      $region9: #{tpu_custom_call.1} parent=5 // pred_check
        _
      $region10: #{tpu_custom_call.1} parent=5 // pred_check_branch
        %126 = sbr.rel (%p123) target = $region12
      $region11: #{tpu_custom_call.1} parent=5 // pred_region
        %s127 = ssub.s32 %s11, 1
      $region12: #{tpu_custom_call.1} parent=5 // pred_fallthru
        _
      %p128 = scmp.lt.s32.totalorder %s11, 2
      // Predicated region
      $region13: #{tpu_custom_call.1} parent=5 // pred_check
        %p129 = pneg %p128
      $region14: #{tpu_custom_call.1} parent=5 // pred_check_branch
        %131 = sbr.rel (%p129) target = $region16
      $region15: #{tpu_custom_call.1} parent=5 // pred_region
        // Predicated region
        $region17: #{tpu_custom_call.1} parent=15 // pred_check
          %p132 = pneg %p49
        $region18: #{tpu_custom_call.1} parent=15 // pred_check_branch
          %134 = sbr.rel (%p132) target = $region20
        $region19: #{tpu_custom_call.1} parent=15 // pred_region
          %s135 = sadd.s32 %s18, %s19
          %p136 = scmp.lt.s32.totalorder %s135, 0
          %s137 = scalar_select %p136, %s135, 0
          %p138 = scmp.lt.s32.totalorder %s137, 0
          %s139 = scalar_select %p138, %s137, 0
          %s140 = smul.addr %s139, 8
          %s141 = scalar_lea.vmem %s0, %s140
          %s142 = sadd.s32 %s18, %s19
          %p143 = scmp.lt.s32.totalorder %s142, 0
          %s144 = scalar_select %p143, %s142, 0
        $region20: #{tpu_custom_call.1} parent=15 // pred_fallthru
          _
        // Predicated region
        $region21: #{tpu_custom_call.1} parent=15 // pred_check
          %p145 = pneg %p81
        $region22: #{tpu_custom_call.1} parent=15 // pred_check_branch
          %147 = sbr.rel (%p145) target = $region24
        $region23: #{tpu_custom_call.1} parent=15 // pred_region
          %s148 = sadd.s32 %s18, %s19
          %p149 = scmp.lt.s32.totalorder %s148, 0
          %s150 = scalar_select %p149, %s148, 0
          %p151 = scmp.lt.s32.totalorder %s150, 0
          %s152 = scalar_select %p151, %s150, 0
          %s153 = smul.addr %s152, 8
          %s154 = scalar_lea.vmem %s1, %s153
          %s155 = sadd.s32 %s18, %s19
          %p156 = scmp.lt.s32.totalorder %s155, 0
          %s157 = scalar_select %p156, %s155, 0
        $region24: #{tpu_custom_call.1} parent=15 // pred_fallthru
          _
      $region16: #{tpu_custom_call.1} parent=5 // pred_fallthru
        _
      %p158 = scmp.le.s32.totalorder 1, %s11
      %p159 = scmp.lt.s32.totalorder %s11, 3
      %p160 = pnand %p158, %p159
      %p161 = pneg %p160
      // Predicated region
      $region25: #{tpu_custom_call.1} parent=5 // pred_check
        _
      $region26: #{tpu_custom_call.1} parent=5 // pred_check_branch
        %163 = sbr.rel (%p160) target = $region28
      $region27: #{tpu_custom_call.1} parent=5 // pred_region
        %s164 = ssub.s32 %s11, 1
        %s165 = sadd.s32 %s20, %s21
        %p166 = scmp.lt.s32.totalorder %s165, 0
        %s167 = scalar_select %p166, %s165, 0
        %p168 = scmp.lt.s32.totalorder %s167, 0
        %s169 = scalar_select %p168, %s167, 0
        %s170 = smul.addr %s169, 8
        %s171 = scalar_lea.vmem %s0, %s170
        %p172 = pneg %p55
        %p173 = pneg %p52
        %s174 = sadd.s32 %s20, %s21
        %p175 = scmp.lt.s32.totalorder %s174, 0
        %s176 = scalar_select %p175, %s174, 0
        %p177 = scmp.lt.s32.totalorder %s176, 0
        %s178 = scalar_select %p177, %s176, 0
        %s179 = smul.addr %s178, 8
        %s180 = scalar_lea.vmem %s1, %s179
        %p181 = pneg %p87
        %p182 = pneg %p84
        %p183 = pneg %p113
        %p184 = pneg %p110
        %s185 = sand.u32 %s100, 1
        %s186 = scalar_lea.sflag [#allocation4], %s185
        %s187 = sand.u32 %s100, 1
        %s188 = smul.addr %s187, 8
        %s189 = scalar_lea.vmem [#allocation3], %s188
        %s190 = sadd.s32 %s20, %s21
        %p191 = scmp.lt.s32.totalorder %s190, 0
        %s192 = scalar_select %p191, %s190, 0
        %p193 = scmp.lt.s32.totalorder %s192, 0
        %s194 = scalar_select %p193, %s192, 0
        %s195 = smul.addr %s194, 8
        %s196 = scalar_lea.vmem %s0, %s195
        %s197 = sadd.s32 %s20, %s21
        %p198 = scmp.lt.s32.totalorder %s197, 0
        %s199 = scalar_select %p198, %s197, 0
        %s200 = sadd.s32 %s20, %s21
        %p201 = scmp.lt.s32.totalorder %s200, 0
        %s202 = scalar_select %p201, %s200, 0
        %p203 = scmp.lt.s32.totalorder %s202, 0
        %s204 = scalar_select %p203, %s202, 0
        %s205 = smul.addr %s204, 8
        %s206 = scalar_lea.vmem %s1, %s205
        %s207 = sadd.s32 %s20, %s21
        %p208 = scmp.lt.s32.totalorder %s207, 0
        %s209 = scalar_select %p208, %s207, 0
        %p210 = scmp.eq.s32.totalorder %s21, 0
        // Predicated region
        $region29: #{tpu_custom_call.1} parent=27 // pred_check
          %p211 = pneg %p210
        $region30: #{tpu_custom_call.1} parent=27 // pred_check_branch
          %213 = sbr.rel (%p211) target = $region32
        $region31: #{tpu_custom_call.1} parent=27 // pred_region
          %vm214 = vcmask 7168
          %215 = vst.msk [vmem:[#allocation2] sm:$0xff] %vm214, 0.0
        $region32: #{tpu_custom_call.1} parent=27 // pred_fallthru
          _
        %v216 = vld [vmem:[%s196] sm:$0xff]
        %v217 = vld [vmem:[%s206] sm:$0xff]
        %vm218 = vcmask 80896
        %v219 = vsel %vm218, %v216, -inf
        %220 = vmax.xlane.f32.xlu0 %v219
        %v221 = vpop.xlane.xlu0 %220
        %v222 = vsub.f32 %v216, %v221
        %v223 = vmul.f32 %v222, 1.442695
        %v224 = vpow.pop %v223
        %v225 = vsel %vm218, %v224, 0.0
        %226 = vadd.xlane.f32.xlu0 %v225
        %v227 = vpop.xlane.xlu0 %226
        %v228 = vlaneseq
        %v229 = vand.u32 %v228, 127
        %230 = vset.pattern.permute.xlu0 0
        %231 = vperm.xlu0 %230, %v217
        %v232 = vpop.permute.xlu0 %231
        %vm233 = vcmp.eq.s32.totalorder %v229, %v232
        %v234 = vsel %vm233, %v216, 0.0
        %v235 = vsel %vm218, %v234, 0.0
        %236 = vadd.xlane.f32.xlu0 %v235
        %v237 = vpop.xlane.xlu0 %236
        %v238 = vsub.f32 %v237, %v221
        %v239 = vlog2.pop %v227
        %v240 = vmul.f32 %v239, 0.6931472
        %v241 = vsub.f32 %v238, %v240
        %v242 = vmax.f32 %v241, -16.118095
        %v243 = vmin.f32 %v242, 0.0
        %v244 = vmul.f32 %v243, 0.7
        %v245 = vmul.f32 %v244, 1.442695
        %v246 = vpow.pop %v245
        %v247 = vsub.f32 1.0, %v246
        %s248 = sadd.s32 %s20, %s21
        %s249 = smul.u32 %s248, 8
        %s250 = sadd.s32 %s249, 8
        %p251 = scmp.le.s32.totalorder %s250, 8
        // Predicated region
        $region33: #{tpu_custom_call.1} parent=27 // pred_check
          %p252 = pneg %p251
        $region34: #{tpu_custom_call.1} parent=27 // pred_check_branch
          %254 = sbr.rel (%p252) target = $region36
        $region35: #{tpu_custom_call.1} parent=27 // pred_region
          %v255 = vld [vmem:[#allocation2] sm:$0xff]
          %v256 = vadd.f32 %v255, %v247
          %vm257 = vcmask 7168
          %258 = vst.msk [vmem:[#allocation2] sm:$0xff] %vm257, %v256
        $region36: #{tpu_custom_call.1} parent=27 // pred_fallthru
          _
        %p259 = scmp.gt.s32.totalorder %s250, 8
        // Predicated region
        $region37: #{tpu_custom_call.1} parent=27 // pred_check
          %p260 = pneg %p259
        $region38: #{tpu_custom_call.1} parent=27 // pred_check_branch
          %262 = sbr.rel (%p260) target = $region40
        $region39: #{tpu_custom_call.1} parent=27 // pred_region
          %v263 = vlaneseq
          %v264 = vshrl.u32 %v263, 7
          %v265 = vstv %s249
          %v266 = vadd.s32 %v265, %v264
          %v267 = vld [vmem:[#allocation2] sm:$0xff]
          %vm268 = vcmp.lt.s32.totalorder %v266, 8
          %v269 = vsel %vm268, %v247, 0.0
          %v270 = vadd.f32 %v267, %v269
          %vm271 = vcmask 7168
          %272 = vst.msk [vmem:[#allocation2] sm:$0xff] %vm271, %v270
        $region40: #{tpu_custom_call.1} parent=27 // pred_fallthru
          _
        // Predicated region
        $region41: #{tpu_custom_call.1} parent=27 // pred_check
          %p273 = pneg %p210
        $region42: #{tpu_custom_call.1} parent=27 // pred_check_branch
          %275 = sbr.rel (%p273) target = $region44
        $region43: #{tpu_custom_call.1} parent=27 // pred_region
          %v276 = vld [vmem:[#allocation2] sm:$0xff]
          %vm277 = vcmask 7168
          %v278 = vsel %vm277, %v276, 0.0
          %279 = vadd.xlane.f32.xlu0 %v278
          %v280 = vpop.xlane.xlu0 %279
          %v281 = vrot.slane %v280, 4
          %v282 = vadd.f32 %v280, %v281
          %v283 = vrot.slane %v282, 2
          %v284 = vadd.f32 %v282, %v283
          %v285 = vrot.slane %v284, 1
          %v286 = vadd.f32 %v284, %v285
          %s287 = vtos %v286
          %v288 = vrcp.pop 5.6
          %s289 = vtos %v288
          %s290 = smul.f32 %s287, %s289
          %v291 = vstv %s290
          %292 = vst [vmem:[%s189] sm:$0xff] %v291
        $region44: #{tpu_custom_call.1} parent=27 // pred_fallthru
          _
        %s293 = sand.u32 %s100, 1
        %s294 = scalar_lea.sflag [#allocation4], %s293
        %s295 = sand.u32 %s100, 1
        %s296 = smul.addr %s295, 8
        %s297 = scalar_lea.vmem [#allocation3], %s296
        // Predicated region
        $region45: #{tpu_custom_call.1} parent=27 // pred_check
          %p298 = pneg %p110
        $region46: #{tpu_custom_call.1} parent=27 // pred_check_branch
          %300 = sbr.rel (%p298) target = $region48
        $region47: #{tpu_custom_call.1} parent=27 // pred_region
          %s302 = ssub.s32 128, 128
          %303 = vsyncadd %s294, %s302
          %s304 = smul.addr %s20, 128
          %s305 = scalar_lea.hbm %s2, %s304
          %s307 = sshll.u32 %s297, 4
          %s308 = int_to_ptr.vmem [resolvable:$true] %s307
          %310 = dma.vmem_to_hbm [thread:$0]  %s308, 128, %s305, %s294
        $region48: #{tpu_custom_call.1} parent=27 // pred_fallthru
          _
      $region28: #{tpu_custom_call.1} parent=5 // pred_fallthru
        _
      %p311 = scmp.le.s32.totalorder 2, %s11
      // Predicated region
      $region49: #{tpu_custom_call.1} parent=5 // pred_check
        %p312 = pneg %p311
      $region50: #{tpu_custom_call.1} parent=5 // pred_check_branch
        %314 = sbr.rel (%p312) target = $region52
      $region51: #{tpu_custom_call.1} parent=5 // pred_region
        %s315 = ssub.s32 %s11, 2
        // Predicated region
        $region53: #{tpu_custom_call.1} parent=51 // pred_check
          %p316 = pneg %p116
        $region54: #{tpu_custom_call.1} parent=51 // pred_check_branch
          %318 = sbr.rel (%p316) target = $region56
        $region55: #{tpu_custom_call.1} parent=51 // pred_region
          %s319 = sand.u32 %s101, 1
          %s320 = scalar_lea.sflag [#allocation4], %s319
          %s321 = sand.u32 %s101, 1
          %s322 = smul.addr %s321, 8
          %s323 = scalar_lea.vmem [#allocation3], %s322
          %324 = dma.done %s320, 128
        $region56: #{tpu_custom_call.1} parent=51 // pred_fallthru
          _
      $region52: #{tpu_custom_call.1} parent=5 // pred_fallthru
        _
    $region6: #{tpu_custom_call.1} parent=1 // loop_footer
      %s15 = sadd.s32 1, %s11
    $region7: #{tpu_custom_call.1} parent=1 // loop_footer_branch
      %10 = sbr.rel target = $region3
    $region8: #{tpu_custom_call.1} parent=1 // loop_exit
      _
    %325 = vsyncpa [#allocation4], 1
    %s326 = scalar_lea.sflag [#allocation4], 1
    %327 = vsyncpa %s326, 1

</llo_original>
